<compile_context>
chip_gen: v7x
topology: tpu7x:2x2x1
jax: 0.10.0
libtpu: 0.0.40
codegen_flags: <defaults>
</compile_context>

<pallas_src>
import functools

import jax
import jax.numpy as jnp
from jax.experimental import pallas as pl
from jax.experimental.pallas import tpu as pltpu


def sf_attn_kernel(u_ref, wspa_ref, w1t_ref, w2t_ref,
                   out_ref, spa_ref, freq_ref, *, inv_hw):
    # u_ref   : (Bn, C, HWp)  native layout / native dtype, HW on lanes
    # wspa_ref: (C, 1)        spatial 1x1-conv weight (f32)
    # w1t_ref : (C, C//2)     Conv_Squeeze weight, transposed (f32)
    # w2t_ref : (C//2, C)     Conv_Excitation weight, transposed (f32)
    # out_ref : (Bn, C, HWp)  gated output, input dtype
    # spa_ref : (Bn, HWp)     spaAtten logits, f32
    # freq_ref: (Bn, C)       freqAtten logits, f32
    u = u_ref[...]                                            # input dtype

    # --- spatial attention: 1x1 conv C -> 1 == channel-weighted sum -------
    # product in the input dtype, accumulation in f32
    wspa = wspa_ref[...].astype(u.dtype)                      # (C, 1)
    q = jnp.sum((u * wspa[None, :, :]).astype(jnp.float32), axis=1)   # (Bn, HWp)
    spa_ref[...] = q

    # --- frequency attention: global avg pool + two tiny matmuls ----------
    z = jnp.sum(u.astype(jnp.float32), axis=-1) * inv_hw      # (Bn, C), f32 acc
    s = jnp.dot(z, w1t_ref[...], preferred_element_type=jnp.float32)  # (Bn, C//2)
    e = jnp.dot(s, w2t_ref[...], preferred_element_type=jnp.float32)  # (Bn, C)
    freq_ref[...] = e

    # --- fused gate: U*sigmoid(e) + U*sigmoid(q) = U*(sig(e)+sig(q)) ------
    gate = jax.nn.sigmoid(e)[:, :, None] + jax.nn.sigmoid(q)[:, None, :]
    out_ref[...] = (u * gate.astype(u.dtype)).astype(out_ref.dtype)


def sf_attention(U_nchw, w_spatial, w_squeeze, w_excite, *, vmem_budget_bytes=None):
    """sfAttention forward.

    U_nchw   : (N, C, H, W)
    w_spatial: (1, C, 1, 1)      spatialAttention.Conv1x1 weight
    w_squeeze: (C//2, C, 1, 1)   frequencyAttention.Conv_Squeeze weight
    w_excite : (C, C//2, 1, 1)   frequencyAttention.Conv_Excitation weight
    Returns (out (N,C,H,W), spaAtten (N,H,W), freqAtten (N,C,1)).
    """
    N, C, H, W = U_nchw.shape
    HW = H * W
    Ch = w_squeeze.shape[0]

    # Lane-dense main output: pad HW to a multiple of 128 (zeros; sliced off
    # after the call).  When HW is already a multiple of 128 this is free.
    HWp = ((HW + 127) // 128) * 128

    u = U_nchw.reshape(N, C, HW)                              # contiguous merge, free
    if HWp != HW:
        u = jnp.pad(u, ((0, 0), (0, 0), (0, HWp - HW)))

    wspa = w_spatial.reshape(C, 1).astype(jnp.float32)        # (C, 1)
    w1t = jnp.transpose(w_squeeze.reshape(Ch, C)).astype(jnp.float32)   # (C, Ch)
    w2t = jnp.transpose(w_excite.reshape(C, Ch)).astype(jnp.float32)    # (Ch, C)

    # ---- VMEM accounting & Bn selection ---------------------------------
    itemsize = U_nchw.dtype.itemsize
    per_batch = (
        2 * 2 * C * HWp * itemsize        # u in + out blocks, double buffered
        + 2 * HWp * 4                     # spaAtten logits block, double buffered
        + 2 * C * 4                       # freqAtten logits block, double buffered
        + 2 * C * HWp * 4                 # in-kernel f32 temporaries (gate, reduce)
    )
    weights_bytes = 4 * (C + 2 * C * Ch)

    try:
        vmem_cap = int(pltpu.get_tpu_info().vmem_capacity_bytes)
    except Exception:
        vmem_cap = 64 << 20               # conservative (v7x per-core VMEM)
    if vmem_budget_bytes is None:
        # ~32 MiB on v5e/v6e (128 MiB VMEM), ~16 MiB on v7x (64 MiB VMEM)
        vmem_budget_bytes = max(8 << 20, vmem_cap // 4)

    # Bn must be a multiple of 8 or equal to N so the 2-D (Bn, HWp)/(Bn, C)
    # output blocks satisfy the (8,128) sublane/lane constraint.
    bn = max(1, int(vmem_budget_bytes) // int(per_batch))
    if bn >= N or N <= 8:
        Bn = N
    else:
        Bn = max(8, (bn // 8) * 8)
        Bn = min(Bn, N)
    # v7x has 2 TensorCores: keep >= 2 grid steps when the batch allows it so
    # the 'parallel' axis can shard across cores.
    if Bn == N and N >= 16:
        Bn = max(8, ((N // 2) // 8) * 8)

    grid = (pl.cdiv(N, Bn),)

    footprint = Bn * per_batch + weights_bytes
    vmem_limit = int(min(max(vmem_cap - (4 << 20), 16 << 20),
                         max(footprint + (4 << 20), 16 << 20)))

    kernel = functools.partial(sf_attn_kernel, inv_hw=float(1.0 / HW))

    out, spa, freq = pl.pallas_call(
        kernel,
        out_shape=(
            jax.ShapeDtypeStruct((N, C, HWp), U_nchw.dtype),  # gated output
            jax.ShapeDtypeStruct((N, HWp), jnp.float32),      # spaAtten logits
            jax.ShapeDtypeStruct((N, C), jnp.float32),        # freqAtten logits
        ),
        grid_spec=pltpu.PrefetchScalarGridSpec(
            num_scalar_prefetch=0,
            grid=grid,
            in_specs=[
                pl.BlockSpec((Bn, C, HWp), lambda n: (n, 0, 0)),
                pl.BlockSpec((C, 1), lambda n: (0, 0)),
                pl.BlockSpec((C, Ch), lambda n: (0, 0)),
                pl.BlockSpec((Ch, C), lambda n: (0, 0)),
            ],
            out_specs=[
                pl.BlockSpec((Bn, C, HWp), lambda n: (n, 0, 0)),
                pl.BlockSpec((Bn, HWp), lambda n: (n, 0)),
                pl.BlockSpec((Bn, C), lambda n: (n, 0)),
            ],
        ),
        compiler_params=pltpu.CompilerParams(
            dimension_semantics=("parallel",),
            vmem_limit_bytes=vmem_limit),
    )(u, wspa, w1t, w2t)

    out_nchw = out[:, :, :HW].reshape(N, C, H, W)             # contiguous, free
    spa_atten = spa[:, :HW].reshape(N, H, W)
    freq_atten = freq.reshape(N, C, 1)
    return out_nchw, spa_atten, freq_atten


def _reference(U, w_spatial, w_squeeze, w_excite):
    # Pure-JAX reference of the PyTorch sfAttention forward.
    N, C, H, W = U.shape
    Ch = C // 2
    # spatialAttention
    q = jnp.einsum('nchw,c->nhw', U, w_spatial.reshape(C))      # (N,H,W) pre-sigmoid
    spa_atten = q
    U_sse = U * jax.nn.sigmoid(q)[:, None, :, :]
    # frequencyAttention
    z = jnp.mean(U, axis=(2, 3))                                # (N,C)
    s = z @ w_squeeze.reshape(Ch, C).T                          # (N,Ch)
    e = s @ w_excite.reshape(C, Ch).T                           # (N,C) pre-sigmoid
    freq_atten = e[:, :, None]                                  # (N,C,1)
    U_cse = U * jax.nn.sigmoid(e)[:, :, None, None]
    return U_cse + U_sse, spa_atten, freq_atten


if __name__ == "__main__":
    key = jax.random.PRNGKey(0)
    k_u, k_ws, k_w1, k_w2 = jax.random.split(key, 4)

    N, C, H, W = 2, 4, 16, 16
    Ch = C // 2

    U = jax.random.normal(k_u, (N, C, H, W), dtype=jnp.float32)
    # deterministic synthetic Conv2d(kernel_size=1, bias=False) weights
    w_spatial = jax.random.normal(k_ws, (1, C, 1, 1), dtype=jnp.float32) * (1.0 / jnp.sqrt(C))
    w_squeeze = jax.random.normal(k_w1, (Ch, C, 1, 1), dtype=jnp.float32) * (1.0 / jnp.sqrt(C))
    w_excite = jax.random.normal(k_w2, (C, Ch, 1, 1), dtype=jnp.float32) * (1.0 / jnp.sqrt(Ch))

    out, spa_atten, freq_atten = sf_attention(U, w_spatial, w_squeeze, w_excite)
    out = jax.block_until_ready(out)
    spa_atten = jax.block_until_ready(spa_atten)
    freq_atten = jax.block_until_ready(freq_atten)

    out_ref, spa_ref, freq_ref = _reference(U, w_spatial, w_squeeze, w_excite)
    assert out.shape == (N, C, H, W)
    assert spa_atten.shape == (N, H, W)
    assert freq_atten.shape == (N, C, 1)
    assert jnp.allclose(out, out_ref, atol=1e-5, rtol=1e-5)
    assert jnp.allclose(spa_atten, spa_ref, atol=1e-5, rtol=1e-5)
    assert jnp.allclose(freq_atten, freq_ref, atol=1e-5, rtol=1e-5)

    print("KERNEL_OK")
</pallas_src>

<mosaic_0001>
module attributes {stable_mosaic.version = 11 : i64} {
  func.func @sf_attn_kernel(%arg0: i32, %arg1: memref<2x4x256xf32, #tpu.memory_space<vmem>>, %arg2: memref<4x1xf32, #tpu.memory_space<vmem>>, %arg3: memref<4x2xf32, #tpu.memory_space<vmem>>, %arg4: memref<2x4xf32, #tpu.memory_space<vmem>>, %arg5: memref<2x4x256xf32, #tpu.memory_space<vmem>>, %arg6: memref<2x256xf32, #tpu.memory_space<vmem>>, %arg7: memref<2x4xf32, #tpu.memory_space<vmem>>) attributes {dimension_semantics = [#tpu.dimension_semantics<parallel>], iteration_bounds = array<i64: 1>, scalar_prefetch = 0 : i64, scratch_operands = 0 : i64, tpu.core_type = #tpu.core_type<tc>, window_params = [{transform_indices = @transform_0, window_bounds = array<i64: 2, 4, 256>}, {pipeline_mode = #tpu.pipeline_mode<synchronous>, transform_indices = @transform_1, window_bounds = array<i64: 4, 1>}, {pipeline_mode = #tpu.pipeline_mode<synchronous>, transform_indices = @transform_2, window_bounds = array<i64: 4, 2>}, {pipeline_mode = #tpu.pipeline_mode<synchronous>, transform_indices = @transform_3, window_bounds = array<i64: 2, 4>}, {transform_indices = @transform_4, window_bounds = array<i64: 2, 4, 256>}, {transform_indices = @transform_5, window_bounds = array<i64: 2, 256>}, {transform_indices = @transform_6, window_bounds = array<i64: 2, 4>}]} {
    %c0 = arith.constant 0 : index
    %c0_0 = arith.constant 0 : index
    %c0_1 = arith.constant 0 : index
    %0 = vector.load %arg1[%c0, %c0_0, %c0_1] : memref<2x4x256xf32, #tpu.memory_space<vmem>>, vector<2x4x256xf32>
    %c0_2 = arith.constant 0 : index
    %c0_3 = arith.constant 0 : index
    %1 = vector.load %arg2[%c0_2, %c0_3] : memref<4x1xf32, #tpu.memory_space<vmem>>, vector<4x1xf32>
    %2 = vector.shape_cast %1 : vector<4x1xf32> to vector<1x4x1xf32>
    %3 = vector.broadcast %2 : vector<1x4x1xf32> to vector<2x4x256xf32>
    %4 = arith.mulf %0, %3 : vector<2x4x256xf32>
    %cst = arith.constant dense<0.000000e+00> : vector<2x256xf32>
    %5 = vector.multi_reduction <add>, %4, %cst [1] : vector<2x4x256xf32> to vector<2x256xf32>
    %c0_4 = arith.constant 0 : index
    %c0_5 = arith.constant 0 : index
    %6 = vector.load %arg6[%c0_4, %c0_5] : memref<2x256xf32, #tpu.memory_space<vmem>>, vector<2x256xf32>
    tpu.vector_store %arg6[%c0_4, %c0_5], %5 {strides = array<i32>} : memref<2x256xf32, #tpu.memory_space<vmem>>, vector<2x256xf32>,
    %cst_6 = arith.constant dense<0.000000e+00> : vector<2x4xf32>
    %7 = vector.multi_reduction <add>, %0, %cst_6 [2] : vector<2x4x256xf32> to vector<2x4xf32>
    %cst_7 = arith.constant 3.906250e-03 : f32
    %8 = vector.broadcast %cst_7 : f32 to vector<2x4xf32>
    %9 = arith.mulf %7, %8 : vector<2x4xf32>
    %c0_8 = arith.constant 0 : index
    %c0_9 = arith.constant 0 : index
    %10 = vector.load %arg3[%c0_8, %c0_9] : memref<4x2xf32, #tpu.memory_space<vmem>>, vector<4x2xf32>
    %cst_10 = arith.constant dense<0.000000e+00> : vector<2x2xf32>
    %11 = tpu.matmul %9, %10, %cst_10 {dimension_numbers = #tpu.dot_dimension_numbers<[1], [0], [0], [1], [0, 0, 1, 1], [], []>} : vector<2x4xf32>, vector<4x2xf32>, vector<2x2xf32> -> vector<2x2xf32>
    %c0_11 = arith.constant 0 : index
    %c0_12 = arith.constant 0 : index
    %12 = vector.load %arg4[%c0_11, %c0_12] : memref<2x4xf32, #tpu.memory_space<vmem>>, vector<2x4xf32>
    %cst_13 = arith.constant dense<0.000000e+00> : vector<2x4xf32>
    %13 = tpu.matmul %11, %12, %cst_13 {dimension_numbers = #tpu.dot_dimension_numbers<[1], [0], [0], [1], [0, 0, 1, 1], [], []>} : vector<2x2xf32>, vector<2x4xf32>, vector<2x4xf32> -> vector<2x4xf32>
    %c0_14 = arith.constant 0 : index
    %c0_15 = arith.constant 0 : index
    %14 = vector.load %arg7[%c0_14, %c0_15] : memref<2x4xf32, #tpu.memory_space<vmem>>, vector<2x4xf32>
    tpu.vector_store %arg7[%c0_14, %c0_15], %13 {strides = array<i32>} : memref<2x4xf32, #tpu.memory_space<vmem>>, vector<2x4xf32>,
    %15 = arith.negf %13 : vector<2x4xf32>
    %16 = math.exp %15 : vector<2x4xf32>
    %cst_16 = arith.constant 1.000000e+00 : f32
    %17 = vector.broadcast %cst_16 : f32 to vector<2x4xf32>
    %18 = arith.addf %17, %16 : vector<2x4xf32>
    %19 = arith.divf %17, %18 : vector<2x4xf32>
    %20 = vector.shape_cast %19 : vector<2x4xf32> to vector<2x4x1xf32>
    %21 = arith.negf %5 : vector<2x256xf32>
    %22 = math.exp %21 : vector<2x256xf32>
    %cst_17 = arith.constant 1.000000e+00 : f32
    %23 = vector.broadcast %cst_17 : f32 to vector<2x256xf32>
    %24 = arith.addf %23, %22 : vector<2x256xf32>
    %25 = arith.divf %23, %24 : vector<2x256xf32>
    %26 = vector.shape_cast %25 : vector<2x256xf32> to vector<2x1x256xf32>
    %27 = vector.broadcast %20 : vector<2x4x1xf32> to vector<2x4x256xf32>
    %28 = vector.broadcast %26 : vector<2x1x256xf32> to vector<2x4x256xf32>
    %29 = arith.addf %27, %28 : vector<2x4x256xf32>
    %30 = arith.mulf %0, %29 : vector<2x4x256xf32>
    %c0_18 = arith.constant 0 : index
    %c0_19 = arith.constant 0 : index
    %c0_20 = arith.constant 0 : index
    %31 = vector.load %arg5[%c0_18, %c0_19, %c0_20] : memref<2x4x256xf32, #tpu.memory_space<vmem>>, vector<2x4x256xf32>
    tpu.vector_store %arg5[%c0_18, %c0_19, %c0_20], %30 {strides = array<i32>} : memref<2x4x256xf32, #tpu.memory_space<vmem>>, vector<2x4x256xf32>,
    return
  }
  func.func @transform_0(%arg0: i32) -> (i32, i32, i32) {
    %c0_i32 = arith.constant 0 : i32
    %c0_i32_0 = arith.constant 0 : i32
    %c0_i32_1 = arith.constant 0 : i32
    return %arg0, %c0_i32, %c0_i32_0 : i32, i32, i32
  }
  func.func @transform_1(%arg0: i32) -> (i32, i32) {
    %c0_i32 = arith.constant 0 : i32
    %c0_i32_0 = arith.constant 0 : i32
    %c0_i32_1 = arith.constant 0 : i32
    return %c0_i32, %c0_i32_0 : i32, i32
  }
  func.func @transform_2(%arg0: i32) -> (i32, i32) {
    %c0_i32 = arith.constant 0 : i32
    %c0_i32_0 = arith.constant 0 : i32
    %c0_i32_1 = arith.constant 0 : i32
    return %c0_i32, %c0_i32_0 : i32, i32
  }
  func.func @transform_3(%arg0: i32) -> (i32, i32) {
    %c0_i32 = arith.constant 0 : i32
    %c0_i32_0 = arith.constant 0 : i32
    %c0_i32_1 = arith.constant 0 : i32
    return %c0_i32, %c0_i32_0 : i32, i32
  }
  func.func @transform_4(%arg0: i32) -> (i32, i32, i32) {
    %c0_i32 = arith.constant 0 : i32
    %c0_i32_0 = arith.constant 0 : i32
    %c0_i32_1 = arith.constant 0 : i32
    return %arg0, %c0_i32, %c0_i32_0 : i32, i32, i32
  }
  func.func @transform_5(%arg0: i32) -> (i32, i32) {
    %c0_i32 = arith.constant 0 : i32
    %c0_i32_0 = arith.constant 0 : i32
    return %arg0, %c0_i32 : i32, i32
  }
  func.func @transform_6(%arg0: i32) -> (i32, i32) {
    %c0_i32 = arith.constant 0 : i32
    %c0_i32_0 = arith.constant 0 : i32
    return %arg0, %c0_i32 : i32, i32
  }
}

</mosaic_0001>

<llo_original>
// kernel: tpu_custom_call.1
$region0: #{tpu_custom_call.1}
  #allocation0 [shape = 'u32[]', space=smem, size = 0x4, offset = 0x4, fixed_abs, tag = 'smem constant byte address 0x4 - core index']
  #allocation1 [shape = 'u32[144,128]{1,0:T(1,128)}', space=vmem, size = 0x12000, scoped, tag = 'internal scratch']
  %s0 = inlined_call_operand.hbm [shape: f32[2,4,256], index: 0, kind: input, shape index: {}]
  %s1 = inlined_call_operand.vmem [shape: f32[4,1], index: 1, kind: input, shape index: {}]
  %s2 = inlined_call_operand.vmem [shape: f32[4,2], index: 2, kind: input, shape index: {}]
  %s3 = inlined_call_operand.vmem [shape: f32[2,4], index: 3, kind: input, shape index: {}]
  %s4 = inlined_call_operand.hbm [shape: f32[2,4,256], index: 4, kind: output, shape index: {0}]
  %s5 = inlined_call_operand.hbm [shape: f32[2,256], index: 5, kind: output, shape index: {1}]
  %s6 = inlined_call_operand.hbm [shape: f32[2,4], index: 6, kind: output, shape index: {2}]
  %7 = xla_tuple %s4, %s5, %s6
  %s8 = sld [smem:[#allocation0]]
  $region46: #{tpu_custom_call.1} parent=0
    _
  %s10 = ssub.s32 1, %s8
  %s11 = scalar_select 0, %s10, %s8
  $region1: #{tpu_custom_call.1} parent=0
    #allocation2 [shape = 'u8[8192]{0}', space=vmem, size = 0x2000, scoped, tag = 'input window, operand 0, single buffered']
    #allocation3 [shape = 's32[1]{0}', space=sflag, size = 0x4, scoped, tag = 'scoped memory for tpu_custom_call.1']
    #allocation4 [shape = 's32[1]{0}', space=sflag, size = 0x4, scoped, tag = 'scoped memory for tpu_custom_call.1']
    #allocation5 [shape = 'u8[8192]{0}', space=vmem, size = 0x2000, scoped, tag = 'output window, operand 0, single buffered']
    #allocation6 [shape = 'u8[2048]{0}', space=vmem, size = 0x800, scoped, tag = 'output window, operand 1, single buffered']
    #allocation7 [shape = 's32[1]{0}', space=sflag, size = 0x4, scoped, tag = 'scoped memory for tpu_custom_call.1']
    #allocation8 [shape = 'u8[1024]{0}', space=vmem, size = 0x400, scoped, tag = 'output window, operand 2, single buffered']
    %12 = vsyncpa [#allocation3], 0
    %13 = vsyncpa [#allocation4], 0
    %14 = vsyncpa [#allocation7], 0
    // Predicated region
    $region2: #{tpu_custom_call.1} parent=1 // pred_check
      _
    $region3: #{tpu_custom_call.1} parent=1 // pred_check_branch
      %16 = sbr.rel (0) target = $region5
    $region4: #{tpu_custom_call.1} parent=1 // pred_region
      %s18 = ssub.s32 256, 256
      %19 = vsyncadd [#allocation3], %s18
      %s20 = sshll.u32 [#allocation2], 4
      %s21 = int_to_ptr.vmem [resolvable:$true] %s20
      %26 = dma.hbm_to_vmem [thread:$0]  %s0, 256, %s21, [#allocation3], 128, 128, 8
    $region5: #{tpu_custom_call.1} parent=1 // pred_fallthru
      _
    // Predicated region
    $region6: #{tpu_custom_call.1} parent=1 // pred_check
      _
    $region7: #{tpu_custom_call.1} parent=1 // pred_check_branch
      %28 = sbr.rel (0) target = $region9
    $region8: #{tpu_custom_call.1} parent=1 // pred_region
      _
    $region9: #{tpu_custom_call.1} parent=1 // pred_fallthru
      _
    // Predicated region
    $region10: #{tpu_custom_call.1} parent=1 // pred_check
      _
    $region11: #{tpu_custom_call.1} parent=1 // pred_check_branch
      %30 = sbr.rel (0) target = $region13
    $region12: #{tpu_custom_call.1} parent=1 // pred_region
      _
    $region13: #{tpu_custom_call.1} parent=1 // pred_fallthru
      _
    // Predicated region
    $region14: #{tpu_custom_call.1} parent=1 // pred_check
      _
    $region15: #{tpu_custom_call.1} parent=1 // pred_check_branch
      %32 = sbr.rel (0) target = $region17
    $region16: #{tpu_custom_call.1} parent=1 // pred_region
      _
    $region17: #{tpu_custom_call.1} parent=1 // pred_fallthru
      _
    // Predicated region
    $region18: #{tpu_custom_call.1} parent=1 // pred_check
      _
    $region19: #{tpu_custom_call.1} parent=1 // pred_check_branch
      %34 = sbr.rel (0) target = $region21
    $region20: #{tpu_custom_call.1} parent=1 // pred_region
      %35 = dma.done [#allocation3], 256
    $region21: #{tpu_custom_call.1} parent=1 // pred_fallthru
      _
    %v36 = vld [vmem:[#allocation2] sm:$0xff]
    %v37 = vld [vmem:[#allocation2 + $0x8] sm:$0xff]
    %v38 = vld [vmem:[%s1] sm:$0xf]
    %40 = vset.pattern.permute.xlu0 0
    %41 = vperm.xlu0 %40, %v38
    %v42 = vpop.permute.xlu0 %41
    %v44 = vunpack.c.l.s4 839922192
    %v45 = vunpack.c.0.s8 %v44
    %v46 = vlaneseq
    %v47 = vshrl.u32 %v46, 7
    %v48 = vsub.s32 %v45, %v47
    %v49 = vrot.slane %v42, %v48
    %v51 = vmul.f32 %v36, %v49
    %v52 = vmul.f32 %v37, %v49
    %v55 = vcombine.high %v51, %v51
    %v56 = vcombine.high %v52, %v52
    %vm59 = vcmask 1043456
    %v60 = vsel %vm59, %v51, 0.0
    %v61 = vrot.slane %v60, 4
    %v62 = vadd.f32 %v60, %v61
    %v63 = vrot.slane %v62, 2
    %v64 = vadd.f32 %v62, %v63
    %v65 = vrot.slane %v64, 1
    %v66 = vadd.f32 %v64, %v65
    %v67 = vsel %vm59, %v55, 0.0
    %v68 = vrot.slane %v67, 4
    %v69 = vadd.f32 %v67, %v68
    %v70 = vrot.slane %v69, 2
    %v71 = vadd.f32 %v69, %v70
    %v72 = vrot.slane %v71, 1
    %v73 = vadd.f32 %v71, %v72
    %v74 = vsel %vm59, %v52, 0.0
    %v75 = vrot.slane %v74, 4
    %v76 = vadd.f32 %v74, %v75
    %v77 = vrot.slane %v76, 2
    %v78 = vadd.f32 %v76, %v77
    %v79 = vrot.slane %v78, 1
    %v80 = vadd.f32 %v78, %v79
    %v81 = vsel %vm59, %v56, 0.0
    %v82 = vrot.slane %v81, 4
    %v83 = vadd.f32 %v81, %v82
    %v84 = vrot.slane %v83, 2
    %v85 = vadd.f32 %v83, %v84
    %v86 = vrot.slane %v85, 1
    %v87 = vadd.f32 %v85, %v86
    %v92 = vcombine.low %v66, %v73
    %v94 = vunpack.c.l.s4 1983009808
    %v95 = vunpack.c.0.s8 %v94
    %v96 = vlaneseq
    %v97 = vshrl.u32 %v96, 7
    %v98 = vsub.s32 %v95, %v97
    %v99 = vrot.slane %v92, %v98
    %v100 = vcombine.low %v80, %v87
    %v102 = vunpack.c.l.s4 1983009808
    %v103 = vunpack.c.0.s8 %v102
    %v104 = vlaneseq
    %v105 = vshrl.u32 %v104, 7
    %v106 = vsub.s32 %v103, %v105
    %v107 = vrot.slane %v100, %v106
    %vm108 = vcmask 1044484
    %v109 = vsel %vm108, %v99, %v99
    %vm110 = vcmask 1046534
    %v111 = vsel %vm110, %v99, %v109
    %v112 = vrot.slane %v107, 7
    %vm113 = vcmask 1041409
    %v114 = vsel %vm113, %v112, %v111
    %vm115 = vcmask 1043459
    %v116 = vsel %vm115, %v112, %v114
    %vm117 = vcmask 1045509
    %v118 = vsel %vm117, %v112, %v116
    %vm119 = vcmask 1047559
    %v120 = vsel %vm119, %v112, %v118
    %122 = vst [vmem:[#allocation6] sm:$0xf] %v120
    %v125 = vcombine.high %v36, %v36
    %v126 = vcombine.high %v37, %v37
    %v129 = vsel %vm59, %v36, 0.0
    %v130 = vsel %vm59, %v125, 0.0
    %v131 = vadd.f32 %v129, %v130
    %132 = vadd.xlane.f32.xlu0 %v131
    %v133 = vpop.xlane.xlu0 %132
    %v134 = vsel %vm59, %v37, 0.0
    %v135 = vsel %vm59, %v126, 0.0
    %v136 = vadd.f32 %v134, %v135
    %137 = vadd.xlane.f32.xlu0 %v136
    %v138 = vpop.xlane.xlu0 %137
    %v139 = vmul.f32 %v133, 0.00390625
    %v140 = vmul.f32 %v138, 0.00390625
    %v141 = vld [vmem:[%s2] sm:$0xf]
    %v144 = vlaneseq
    %v145 = vand.u32 %v144, 127
    %v146 = vlaneseq
    %v147 = vshrl.u32 %v146, 7
    %v148 = vsub.s32 %v145, %v147
    %v149 = vrot.slane %v139, %v148
    %v150 = vlaneseq
    %v151 = vshrl.u32 %v150, 7
    %v152 = vsub.s32 %v145, %v151
    %v153 = vrot.slane %v140, %v152
    %v154 = vsel %vm113, %v153, %v149
    %vm155 = vcmask 31744
    %v156 = vsel %vm155, %v154, 0
    %v159 = vsel %vm59, %v141, 0
    %161 = vmatprep.subr.mxu0 0.0
    %162 = vmatpush1.msra.mxu0 %v159
    %163 = vmatprep.subr.mxu0 0.0
    %164 = vmatpush1.msra.mxu0 0.0
    %165 = vmatprep.subr.mxu0 0.0
    %166 = vmatpush1.msra.mxu0 0.0
    %167 = vmatprep.subr.mxu0 0.0
    %168 = vmatpush1.msra.mxu0 0.0
    %169 = vmatprep.subr.mxu0 0.0
    %170 = vmatpush1.msra.mxu0 0.0
    %171 = vmatprep.subr.mxu0 0.0
    %172 = vmatpush1.msra.mxu0 0.0
    %173 = vmatprep.subr.mxu0 0.0
    %174 = vmatpush1.msra.mxu0 0.0
    %175 = vmatprep.subr.mxu0 0.0
    %176 = vmatpush1.msra.mxu0 0.0
    %177 = vmatprep.subr.mxu0 0.0
    %178 = vmatpush1.msra.mxu0 0.0
    %179 = vmatprep.subr.mxu0 0.0
    %180 = vmatpush1.msra.mxu0 0.0
    %181 = vmatprep.subr.mxu0 0.0
    %182 = vmatpush1.msra.mxu0 0.0
    %183 = vmatprep.subr.mxu0 0.0
    %184 = vmatpush1.msra.mxu0 0.0
    %185 = vmatprep.subr.mxu0 0.0
    %186 = vmatpush1.msra.mxu0 0.0
    %187 = vmatprep.subr.mxu0 0.0
    %188 = vmatpush1.msra.mxu0 0.0
    %189 = vmatprep.subr.mxu0 0.0
    %190 = vmatpush1.msra.mxu0 0.0
    %191 = vmatprep.subr.mxu0 0.0
    %192 = vmatpush1.msra.mxu0 0.0
    %193 = vmatprep.subr.mxu0 0.0
    %194 = vmatpush1.msra.mxu0 0.0
    %195 = vmatprep.subr.mxu0 0.0
    %196 = vmatpush1.msra.mxu0 0.0
    %197 = vmatprep.subr.mxu0 0.0
    %198 = vmatpush1.msra.mxu0 0.0
    %199 = vmatprep.subr.mxu0 0.0
    %200 = vmatpush1.msra.mxu0 0.0
    %201 = vmatprep.subr.mxu0 0.0
    %202 = vmatpush1.msra.mxu0 0.0
    %203 = vmatprep.subr.mxu0 0.0
    %204 = vmatpush1.msra.mxu0 0.0
    %205 = vmatprep.subr.mxu0 0.0
    %206 = vmatpush1.msra.mxu0 0.0
    %207 = vmatprep.subr.mxu0 0.0
    %208 = vmatpush1.msra.mxu0 0.0
    %209 = vmatprep.subr.mxu0 0.0
    %210 = vmatpush1.msra.mxu0 0.0
    %211 = vmatprep.subr.mxu0 0.0
    %212 = vmatpush1.msra.mxu0 0.0
    %213 = vmatprep.subr.mxu0 0.0
    %214 = vmatpush1.msra.mxu0 0.0
    %215 = vmatprep.subr.mxu0 0.0
    %216 = vmatpush1.msra.mxu0 0.0
    %217 = vmatprep.subr.mxu0 0.0
    %218 = vmatpush1.msra.mxu0 0.0
    %219 = vmatprep.subr.mxu0 0.0
    %220 = vmatpush1.msra.mxu0 0.0
    %221 = vmatprep.subr.mxu0 0.0
    %222 = vmatpush1.msra.mxu0 0.0
    %223 = vmatprep.subr.mxu0 0.0
    %224 = vmatpush1.msra.mxu0 0.0
    %225 = vmatprep.mubr.f32.mxu0 0.0
    %226 = vmatmul.mubr.f32.gmra.mrb[0].mxu0 %v156
    %v227 = vpop.f32.mrb[0].mxu0
    %v228 = vadd.f32 0.0, %v227
    %v229 = vpop.f32.mrb[0].mxu0
    %230 = vdwg.mxu0
    %v231 = vld [vmem:[%s3] sm:$0x3]
    %vm232 = vcmask 15360
    %v234 = vsel %vm232, %v228, 0
    %vm236 = vcmask 1041408
    %v238 = vsel %vm236, %v231, 0
    %240 = vmatprep.subr.mxu0 0.0
    %241 = vmatpush1.msra.mxu0 %v238
    %242 = vmatprep.subr.mxu0 0.0
    %243 = vmatpush1.msra.mxu0 0.0
    %244 = vmatprep.subr.mxu0 0.0
    %245 = vmatpush1.msra.mxu0 0.0
    %246 = vmatprep.subr.mxu0 0.0
    %247 = vmatpush1.msra.mxu0 0.0
    %248 = vmatprep.subr.mxu0 0.0
    %249 = vmatpush1.msra.mxu0 0.0
    %250 = vmatprep.subr.mxu0 0.0
    %251 = vmatpush1.msra.mxu0 0.0
    %252 = vmatprep.subr.mxu0 0.0
    %253 = vmatpush1.msra.mxu0 0.0
    %254 = vmatprep.subr.mxu0 0.0
    %255 = vmatpush1.msra.mxu0 0.0
    %256 = vmatprep.subr.mxu0 0.0
    %257 = vmatpush1.msra.mxu0 0.0
    %258 = vmatprep.subr.mxu0 0.0
    %259 = vmatpush1.msra.mxu0 0.0
    %260 = vmatprep.subr.mxu0 0.0
    %261 = vmatpush1.msra.mxu0 0.0
    %262 = vmatprep.subr.mxu0 0.0
    %263 = vmatpush1.msra.mxu0 0.0
    %264 = vmatprep.subr.mxu0 0.0
    %265 = vmatpush1.msra.mxu0 0.0
    %266 = vmatprep.subr.mxu0 0.0
    %267 = vmatpush1.msra.mxu0 0.0
    %268 = vmatprep.subr.mxu0 0.0
    %269 = vmatpush1.msra.mxu0 0.0
    %270 = vmatprep.subr.mxu0 0.0
    %271 = vmatpush1.msra.mxu0 0.0
    %272 = vmatprep.subr.mxu0 0.0
    %273 = vmatpush1.msra.mxu0 0.0
    %274 = vmatprep.subr.mxu0 0.0
    %275 = vmatpush1.msra.mxu0 0.0
    %276 = vmatprep.subr.mxu0 0.0
    %277 = vmatpush1.msra.mxu0 0.0
    %278 = vmatprep.subr.mxu0 0.0
    %279 = vmatpush1.msra.mxu0 0.0
    %280 = vmatprep.subr.mxu0 0.0
    %281 = vmatpush1.msra.mxu0 0.0
    %282 = vmatprep.subr.mxu0 0.0
    %283 = vmatpush1.msra.mxu0 0.0
    %284 = vmatprep.subr.mxu0 0.0
    %285 = vmatpush1.msra.mxu0 0.0
    %286 = vmatprep.subr.mxu0 0.0
    %287 = vmatpush1.msra.mxu0 0.0
    %288 = vmatprep.subr.mxu0 0.0
    %289 = vmatpush1.msra.mxu0 0.0
    %290 = vmatprep.subr.mxu0 0.0
    %291 = vmatpush1.msra.mxu0 0.0
    %292 = vmatprep.subr.mxu0 0.0
    %293 = vmatpush1.msra.mxu0 0.0
    %294 = vmatprep.subr.mxu0 0.0
    %295 = vmatpush1.msra.mxu0 0.0
    %296 = vmatprep.subr.mxu0 0.0
    %297 = vmatpush1.msra.mxu0 0.0
    %298 = vmatprep.subr.mxu0 0.0
    %299 = vmatpush1.msra.mxu0 0.0
    %300 = vmatprep.subr.mxu0 0.0
    %301 = vmatpush1.msra.mxu0 0.0
    %302 = vmatprep.subr.mxu0 0.0
    %303 = vmatpush1.msra.mxu0 0.0
    %304 = vmatprep.mubr.f32.mxu0 0.0
    %305 = vmatmul.mubr.f32.gmra.mrb[0].mxu0 %v234
    %v306 = vpop.f32.mrb[0].mxu0
    %v307 = vadd.f32 0.0, %v306
    %v308 = vpop.f32.mrb[0].mxu0
    %309 = vdwg.mxu0
    %vm310 = vcmask 25600
    %311 = vst.msk [vmem:[#allocation8] sm:$0x3] %vm310, %v307
    %v312 = vxor.u32 %v307, 2147483648
    %v313 = vmul.f32 %v312, 1.442695
    %v314 = vpow.pop %v313
    %v315 = vadd.f32 %v314, 1.0
    %v316 = vrcp.pop %v315
    %v317 = vmul.f32 1.0, %v316
    %v318 = vlaneseq
    %v319 = vshrl.u32 %v318, 7
    %v320 = vsub.s32 0, %v319
    %v321 = vrot.slane %v317, %v320
    %323 = vbcast.lane.b32.xlu0 %v321, 256
    %v324 = vpop.permute.xlu0 %323
    %v325 = vlaneseq
    %v326 = vshrl.u32 %v325, 7
    %v327 = vsub.s32 1, %v326
    %v328 = vrot.slane %v317, %v327
    %330 = vbcast.lane.b32.xlu0 %v328, 256
    %v331 = vpop.permute.xlu0 %330
    %v332 = vxor.u32 %v66, 2147483648
    %v333 = vxor.u32 %v73, 2147483648
    %v334 = vxor.u32 %v80, 2147483648
    %v335 = vxor.u32 %v87, 2147483648
    %v336 = vmul.f32 %v332, 1.442695
    %v337 = vpow.pop %v336
    %v338 = vmul.f32 %v333, 1.442695
    %v339 = vpow.pop %v338
    %v340 = vmul.f32 %v334, 1.442695
    %v341 = vpow.pop %v340
    %v342 = vmul.f32 %v335, 1.442695
    %v343 = vpow.pop %v342
    %v344 = vadd.f32 %v337, 1.0
    %v345 = vadd.f32 %v339, 1.0
    %v346 = vadd.f32 %v341, 1.0
    %v347 = vadd.f32 %v343, 1.0
    %v348 = vrcp.pop %v344
    %v349 = vmul.f32 1.0, %v348
    %v350 = vrcp.pop %v345
    %v351 = vmul.f32 1.0, %v350
    %v352 = vrcp.pop %v346
    %v353 = vmul.f32 1.0, %v352
    %v354 = vrcp.pop %v347
    %v355 = vmul.f32 1.0, %v354
    %v356 = vadd.f32 %v324, %v349
    %v357 = vadd.f32 %v324, %v351
    %v358 = vadd.f32 %v331, %v353
    %v359 = vadd.f32 %v331, %v355
    %v364 = vcombine.low %v356, %v357
    %v365 = vcombine.low %v358, %v359
    %v368 = vmul.f32 %v36, %v364
    %v369 = vmul.f32 %v37, %v365
    %370 = vst [vmem:[#allocation5] sm:$0xff] %v368
    %371 = vst [vmem:[#allocation5 + $0x8] sm:$0xff] %v369
    // Predicated region
    $region22: #{tpu_custom_call.1} parent=1 // pred_check
      _
    $region23: #{tpu_custom_call.1} parent=1 // pred_check_branch
      %373 = sbr.rel (0) target = $region25
    $region24: #{tpu_custom_call.1} parent=1 // pred_region
      %s375 = ssub.s32 256, 256
      %376 = vsyncadd [#allocation4], %s375
      %s377 = sshll.u32 [#allocation5], 4
      %s378 = int_to_ptr.vmem [resolvable:$true] %s377
      %383 = dma.vmem_to_hbm [thread:$0]  %s378, 256, %s4, [#allocation4], 128, 128, 8
    $region25: #{tpu_custom_call.1} parent=1 // pred_fallthru
      _
    // Predicated region
    $region26: #{tpu_custom_call.1} parent=1 // pred_check
      _
    $region27: #{tpu_custom_call.1} parent=1 // pred_check_branch
      %385 = sbr.rel (0) target = $region29
    $region28: #{tpu_custom_call.1} parent=1 // pred_region
      %s387 = ssub.s32 64, 64
      %388 = vsyncadd [#allocation7], %s387
      %s390 = sshll.u32 [#allocation6], 4
      %s391 = int_to_ptr.vmem [resolvable:$true] %s390
      %393 = dma.vmem_to_hbm [thread:$0]  %s391, 64, %s5, [#allocation7]
    $region29: #{tpu_custom_call.1} parent=1 // pred_fallthru
      _
    // Predicated region
    $region30: #{tpu_custom_call.1} parent=1 // pred_check
      _
    $region31: #{tpu_custom_call.1} parent=1 // pred_check_branch
      %395 = sbr.rel (0) target = $region33
    $region32: #{tpu_custom_call.1} parent=1 // pred_region
      %s397 = ssub.s32 32, 32
      %398 = vsyncadd [#allocation7], %s397
      %s400 = sshll.u32 [#allocation8], 4
      %s401 = int_to_ptr.vmem [resolvable:$true] %s400
      %403 = dma.vmem_to_hbm [thread:$0]  %s401, 32, %s6, [#allocation7]
    $region33: #{tpu_custom_call.1} parent=1 // pred_fallthru
      _
    // Predicated region
    $region34: #{tpu_custom_call.1} parent=1 // pred_check
      _
    $region35: #{tpu_custom_call.1} parent=1 // pred_check_branch
      %405 = sbr.rel (0) target = $region37
    $region36: #{tpu_custom_call.1} parent=1 // pred_region
      %406 = dma.done [#allocation4], 256
    $region37: #{tpu_custom_call.1} parent=1 // pred_fallthru
      _
    // Predicated region
    $region38: #{tpu_custom_call.1} parent=1 // pred_check
      _
    $region39: #{tpu_custom_call.1} parent=1 // pred_check_branch
      %408 = sbr.rel (0) target = $region41
    $region40: #{tpu_custom_call.1} parent=1 // pred_region
      %409 = dma.done [#allocation7], 64
    $region41: #{tpu_custom_call.1} parent=1 // pred_fallthru
      _
    // Predicated region
    $region42: #{tpu_custom_call.1} parent=1 // pred_check
      _
    $region43: #{tpu_custom_call.1} parent=1 // pred_check_branch
      %411 = sbr.rel (0) target = $region45
    $region44: #{tpu_custom_call.1} parent=1 // pred_region
      %412 = dma.done [#allocation7], 32
    $region45: #{tpu_custom_call.1} parent=1 // pred_fallthru
      _
    %413 = vsyncpa [#allocation3], 1
    %414 = vsyncpa [#allocation4], 1
    %415 = vsyncpa [#allocation7], 1

</llo_original>
